<compile_context>
chip_gen: v5e
topology: v5e:2x2
jax: 0.10.0
libtpu: 0.0.40
codegen_flags: <defaults>
</compile_context>

<pallas_src>
import math

import jax
import jax.numpy as jnp
from jax.experimental import pallas as pl
from jax.experimental.pallas import tpu as pltpu


def _round_up(x, m):
    return ((x + m - 1) // m) * m


def _gelu_tanh(x):
    # tanh-approximate GELU.
    # TODO(synk): PyTorch f.gelu default is the exact erf-based GELU; we use the
    # tanh approximation since lax.erf lowering in Mosaic is not guaranteed.
    c = 0.7978845608028654  # sqrt(2/pi)
    return 0.5 * x * (1.0 + jnp.tanh(c * (x + 0.044715 * x * x * x)))


def ffn_kernel(x_ref, w1_ref, b1_ref, w2_ref, b2_ref, o_ref):
    # x_ref:  (TM, D)   -- one block of tokens
    # w1_ref: (D, H), b1_ref: (1, H)   -- resident in VMEM (constant block index)
    # w2_ref: (H, D), b2_ref: (1, D)   -- resident in VMEM
    # o_ref:  (TM, D)
    x = x_ref[...]
    h = jnp.dot(x, w1_ref[...], preferred_element_type=jnp.float32)
    h = h + b1_ref[...]
    h = _gelu_tanh(h)
    y = jnp.dot(h.astype(w2_ref.dtype), w2_ref[...],
                preferred_element_type=jnp.float32)
    y = y + b2_ref[...]
    o_ref[...] = y.astype(o_ref.dtype)


def feed_forward(x, w1, b1, w2, b2, *, tm=256):
    """y = gelu(x @ w1 + b1) @ w2 + b2 over the last axis of x.

    x: (..., D); w1: (D, H); b1: (H,); w2: (H, D); b2: (D,)
    (w1/w2 are the transposed nn.Linear weights so the kernel does x @ W.)
    """
    *lead, D = x.shape
    H = w1.shape[1]
    assert w1.shape == (D, H) and w2.shape == (H, D)
    assert b1.shape == (H,) and b2.shape == (D,)

    n = math.prod(lead) if lead else 1
    x2 = x.reshape(n, D)

    # Row-block size: multiple of 8 (sublane), capped at the padded row count.
    tm = min(tm, _round_up(n, 8))
    n_pad = _round_up(n, tm)
    if n_pad != n:
        x2 = jnp.pad(x2, ((0, n_pad - n), (0, 0)))

    b1_2d = b1.reshape(1, H)
    b2_2d = b2.reshape(1, D)

    grid = (n_pad // tm,)
    out = pl.pallas_call(
        ffn_kernel,
        out_shape=jax.ShapeDtypeStruct((n_pad, D), x.dtype),
        grid=grid,
        in_specs=[
            pl.BlockSpec((tm, D), lambda i: (i, 0)),   # x block (pipelined)
            pl.BlockSpec((D, H), lambda i: (0, 0)),    # W1 resident in VMEM
            pl.BlockSpec((1, H), lambda i: (0, 0)),    # b1 resident in VMEM
            pl.BlockSpec((H, D), lambda i: (0, 0)),    # W2 resident in VMEM
            pl.BlockSpec((1, D), lambda i: (0, 0)),    # b2 resident in VMEM
        ],
        out_specs=pl.BlockSpec((tm, D), lambda i: (i, 0)),
        compiler_params=pltpu.CompilerParams(
            dimension_semantics=("parallel",),
        ),
    )(x2, w1, b1_2d, w2, b2_2d)

    if n_pad != n:
        out = out[:n]
    return out.reshape(*lead, D)


if __name__ == "__main__":
    # Dimension(token=128); hidden width is fixed to 1000 by the module.
    B, S = 2, 8
    D = 128
    H = 1000

    key = jax.random.PRNGKey(0)
    kx, kw1, kb1, kw2, kb2 = jax.random.split(key, 5)

    x = jax.random.normal(kx, (B, S, D), dtype=jnp.float32)
    # nn.Linear(in, out) stores weight (out, in) and computes x @ W.T + b;
    # we build the transposed layouts directly (fc1.weight.T, fc2.weight.T).
    w1 = jax.random.normal(kw1, (D, H), dtype=jnp.float32) * (1.0 / math.sqrt(D))
    b1 = jax.random.normal(kb1, (H,), dtype=jnp.float32) * 0.01
    w2 = jax.random.normal(kw2, (H, D), dtype=jnp.float32) * (1.0 / math.sqrt(H))
    b2 = jax.random.normal(kb2, (D,), dtype=jnp.float32) * 0.01

    out = feed_forward(x, w1, b1, w2, b2)
    out = jax.block_until_ready(out)

    # Pure-JAX reference: fc2(gelu(fc1(x)))
    ref_h = _gelu_tanh(jnp.einsum("bsd,dh->bsh", x, w1) + b1)
    ref = jnp.einsum("bsh,hd->bsd", ref_h, w2) + b2

    assert out.shape == (B, S, D)
    assert out.dtype == jnp.float32
    assert jnp.allclose(out, ref, atol=2e-2, rtol=2e-2), float(
        jnp.max(jnp.abs(out - ref)))

    print("KERNEL_OK")
</pallas_src>

<mosaic_0001>
module attributes {stable_mosaic.version = 11 : i64} {
  func.func @ffn_kernel(%arg0: i32, %arg1: memref<16x128xf32, #tpu.memory_space<vmem>>, %arg2: memref<128x1000xf32, #tpu.memory_space<vmem>>, %arg3: memref<1x1000xf32, #tpu.memory_space<vmem>>, %arg4: memref<1000x128xf32, #tpu.memory_space<vmem>>, %arg5: memref<1x128xf32, #tpu.memory_space<vmem>>, %arg6: memref<16x128xf32, #tpu.memory_space<vmem>>) attributes {dimension_semantics = [#tpu.dimension_semantics<parallel>], iteration_bounds = array<i64: 1>, scalar_prefetch = 0 : i64, scratch_operands = 0 : i64, tpu.core_type = #tpu.core_type<tc>, window_params = [{transform_indices = @transform_0, window_bounds = array<i64: 16, 128>}, {pipeline_mode = #tpu.pipeline_mode<synchronous>, transform_indices = @transform_1, window_bounds = array<i64: 128, 1000>}, {pipeline_mode = #tpu.pipeline_mode<synchronous>, transform_indices = @transform_2, window_bounds = array<i64: 1, 1000>}, {pipeline_mode = #tpu.pipeline_mode<synchronous>, transform_indices = @transform_3, window_bounds = array<i64: 1000, 128>}, {pipeline_mode = #tpu.pipeline_mode<synchronous>, transform_indices = @transform_4, window_bounds = array<i64: 1, 128>}, {transform_indices = @transform_5, window_bounds = array<i64: 16, 128>}]} {
    %c0 = arith.constant 0 : index
    %c0_0 = arith.constant 0 : index
    %0 = vector.load %arg1[%c0, %c0_0] : memref<16x128xf32, #tpu.memory_space<vmem>>, vector<16x128xf32>
    %c0_1 = arith.constant 0 : index
    %c0_2 = arith.constant 0 : index
    %1 = vector.load %arg2[%c0_1, %c0_2] : memref<128x1000xf32, #tpu.memory_space<vmem>>, vector<128x1000xf32>
    %cst = arith.constant dense<0.000000e+00> : vector<16x1000xf32>
    %2 = tpu.matmul %0, %1, %cst {dimension_numbers = #tpu.dot_dimension_numbers<[1], [0], [0], [1], [0, 0, 1, 1], [], []>} : vector<16x128xf32>, vector<128x1000xf32>, vector<16x1000xf32> -> vector<16x1000xf32>
    %c0_3 = arith.constant 0 : index
    %c0_4 = arith.constant 0 : index
    %3 = vector.load %arg3[%c0_3, %c0_4] : memref<1x1000xf32, #tpu.memory_space<vmem>>, vector<1x1000xf32>
    %4 = vector.broadcast %3 : vector<1x1000xf32> to vector<16x1000xf32>
    %5 = arith.addf %2, %4 : vector<16x1000xf32>
    %cst_5 = arith.constant 5.000000e-01 : f32
    %6 = vector.broadcast %cst_5 : f32 to vector<16x1000xf32>
    %7 = arith.mulf %6, %5 : vector<16x1000xf32>
    %cst_6 = arith.constant 4.471500e-02 : f32
    %8 = vector.broadcast %cst_6 : f32 to vector<16x1000xf32>
    %9 = arith.mulf %8, %5 : vector<16x1000xf32>
    %10 = arith.mulf %9, %5 : vector<16x1000xf32>
    %11 = arith.mulf %10, %5 : vector<16x1000xf32>
    %12 = arith.addf %5, %11 : vector<16x1000xf32>
    %cst_7 = arith.constant 0.797884583 : f32
    %13 = vector.broadcast %cst_7 : f32 to vector<16x1000xf32>
    %14 = arith.mulf %13, %12 : vector<16x1000xf32>
    %15 = math.tanh %14 : vector<16x1000xf32>
    %cst_8 = arith.constant 1.000000e+00 : f32
    %16 = vector.broadcast %cst_8 : f32 to vector<16x1000xf32>
    %17 = arith.addf %16, %15 : vector<16x1000xf32>
    %18 = arith.mulf %7, %17 : vector<16x1000xf32>
    %c0_9 = arith.constant 0 : index
    %c0_10 = arith.constant 0 : index
    %19 = vector.load %arg4[%c0_9, %c0_10] : memref<1000x128xf32, #tpu.memory_space<vmem>>, vector<1000x128xf32>
    %cst_11 = arith.constant dense<0.000000e+00> : vector<16x128xf32>
    %20 = tpu.matmul %18, %19, %cst_11 {dimension_numbers = #tpu.dot_dimension_numbers<[1], [0], [0], [1], [0, 0, 1, 1], [], []>} : vector<16x1000xf32>, vector<1000x128xf32>, vector<16x128xf32> -> vector<16x128xf32>
    %c0_12 = arith.constant 0 : index
    %c0_13 = arith.constant 0 : index
    %21 = vector.load %arg5[%c0_12, %c0_13] : memref<1x128xf32, #tpu.memory_space<vmem>>, vector<1x128xf32>
    %22 = vector.broadcast %21 : vector<1x128xf32> to vector<16x128xf32>
    %23 = arith.addf %20, %22 : vector<16x128xf32>
    %c0_14 = arith.constant 0 : index
    %c0_15 = arith.constant 0 : index
    %24 = vector.load %arg6[%c0_14, %c0_15] : memref<16x128xf32, #tpu.memory_space<vmem>>, vector<16x128xf32>
    tpu.vector_store %arg6[%c0_14, %c0_15], %23 {strides = array<i32>} : memref<16x128xf32, #tpu.memory_space<vmem>>, vector<16x128xf32>,
    return
  }
  func.func @transform_0(%arg0: i32) -> (i32, i32) {
    %c0_i32 = arith.constant 0 : i32
    %c0_i32_0 = arith.constant 0 : i32
    return %arg0, %c0_i32 : i32, i32
  }
  func.func @transform_1(%arg0: i32) -> (i32, i32) {
    %c0_i32 = arith.constant 0 : i32
    %c0_i32_0 = arith.constant 0 : i32
    %c0_i32_1 = arith.constant 0 : i32
    return %c0_i32, %c0_i32_0 : i32, i32
  }
  func.func @transform_2(%arg0: i32) -> (i32, i32) {
    %c0_i32 = arith.constant 0 : i32
    %c0_i32_0 = arith.constant 0 : i32
    %c0_i32_1 = arith.constant 0 : i32
    return %c0_i32, %c0_i32_0 : i32, i32
  }
  func.func @transform_3(%arg0: i32) -> (i32, i32) {
    %c0_i32 = arith.constant 0 : i32
    %c0_i32_0 = arith.constant 0 : i32
    %c0_i32_1 = arith.constant 0 : i32
    return %c0_i32, %c0_i32_0 : i32, i32
  }
  func.func @transform_4(%arg0: i32) -> (i32, i32) {
    %c0_i32 = arith.constant 0 : i32
    %c0_i32_0 = arith.constant 0 : i32
    %c0_i32_1 = arith.constant 0 : i32
    return %c0_i32, %c0_i32_0 : i32, i32
  }
  func.func @transform_5(%arg0: i32) -> (i32, i32) {
    %c0_i32 = arith.constant 0 : i32
    %c0_i32_0 = arith.constant 0 : i32
    return %arg0, %c0_i32 : i32, i32
  }
}

</mosaic_0001>

<llo_original>
// kernel: tpu_custom_call.1
$region0: #{tpu_custom_call.1}
  #allocation0 [shape = 'u32[]', space=smem, size = 0x4, offset = 0x4, fixed_abs, tag = 'smem constant byte address 0x4 - core index']
  #allocation1 [shape = 'u32[72,128]{1,0:T(1,128)}', space=vmem, size = 0x9000, scoped, tag = 'internal scratch']
  %s0 = inlined_call_operand.vmem [shape: f32[16,128], index: 0, kind: input, shape index: {}]
  %s1 = inlined_call_operand.vmem [shape: f32[128,1000], index: 1, kind: input, shape index: {}]
  %s2 = inlined_call_operand.vmem [shape: f32[1,1000], index: 2, kind: input, shape index: {}]
  %s3 = inlined_call_operand.vmem [shape: f32[1000,128], index: 3, kind: input, shape index: {}]
  %s4 = inlined_call_operand.vmem [shape: f32[1,128], index: 4, kind: input, shape index: {}]
  %s5 = inlined_call_operand.hbm [shape: f32[16,128], index: 5, kind: output, shape index: {}]
  %s6 = sld [smem:[#allocation0]]
  $region30: #{tpu_custom_call.1} parent=0
    _
  %s8 = ssub.s32 1, %s6
  %s9 = scalar_select 0, %s8, %s6
  $region1: #{tpu_custom_call.1} parent=0
    #allocation2 [shape = 'u8[8192]{0}', space=vmem, size = 0x2000, scoped, tag = 'output window, operand 0, single buffered']
    #allocation3 [shape = 's32[1]{0}', space=sflag, size = 0x4, scoped, tag = 'scoped memory for tpu_custom_call.1']
    %10 = vsyncpa [#allocation3], 0
    // Predicated region
    $region2: #{tpu_custom_call.1} parent=1 // pred_check
      _
    $region3: #{tpu_custom_call.1} parent=1 // pred_check_branch
      %12 = sbr.rel (0) target = $region5
    $region4: #{tpu_custom_call.1} parent=1 // pred_region
      _
    $region5: #{tpu_custom_call.1} parent=1 // pred_fallthru
      _
    // Predicated region
    $region6: #{tpu_custom_call.1} parent=1 // pred_check
      _
    $region7: #{tpu_custom_call.1} parent=1 // pred_check_branch
      %14 = sbr.rel (0) target = $region9
    $region8: #{tpu_custom_call.1} parent=1 // pred_region
      _
    $region9: #{tpu_custom_call.1} parent=1 // pred_fallthru
      _
    // Predicated region
    $region10: #{tpu_custom_call.1} parent=1 // pred_check
      _
    $region11: #{tpu_custom_call.1} parent=1 // pred_check_branch
      %16 = sbr.rel (0) target = $region13
    $region12: #{tpu_custom_call.1} parent=1 // pred_region
      _
    $region13: #{tpu_custom_call.1} parent=1 // pred_fallthru
      _
    // Predicated region
    $region14: #{tpu_custom_call.1} parent=1 // pred_check
      _
    $region15: #{tpu_custom_call.1} parent=1 // pred_check_branch
      %18 = sbr.rel (0) target = $region17
    $region16: #{tpu_custom_call.1} parent=1 // pred_region
      _
    $region17: #{tpu_custom_call.1} parent=1 // pred_fallthru
      _
    // Predicated region
    $region18: #{tpu_custom_call.1} parent=1 // pred_check
      _
    $region19: #{tpu_custom_call.1} parent=1 // pred_check_branch
      %20 = sbr.rel (0) target = $region21
    $region20: #{tpu_custom_call.1} parent=1 // pred_region
      _
    $region21: #{tpu_custom_call.1} parent=1 // pred_fallthru
      _
    %v21 = vld [vmem:[%s0] sm:$0xff]
    %v22 = vld [vmem:[%s0 + $0x8] sm:$0xff]
    %v23 = vld [vmem:[%s1] sm:$0xff]
    %v24 = vld [vmem:[%s1 + $0x8] sm:$0xff]
    %v25 = vld [vmem:[%s1 + $0x10] sm:$0xff]
    %v26 = vld [vmem:[%s1 + $0x18] sm:$0xff]
    %v27 = vld [vmem:[%s1 + $0x20] sm:$0xff]
    %v28 = vld [vmem:[%s1 + $0x28] sm:$0xff]
    %v29 = vld [vmem:[%s1 + $0x30] sm:$0xff]
    %v30 = vld [vmem:[%s1 + $0x38] sm:$0xff]
    %v31 = vld [vmem:[%s1 + $0x40] sm:$0xff]
    %v32 = vld [vmem:[%s1 + $0x48] sm:$0xff]
    %v33 = vld [vmem:[%s1 + $0x50] sm:$0xff]
    %v34 = vld [vmem:[%s1 + $0x58] sm:$0xff]
    %v35 = vld [vmem:[%s1 + $0x60] sm:$0xff]
    %v36 = vld [vmem:[%s1 + $0x68] sm:$0xff]
    %v37 = vld [vmem:[%s1 + $0x70] sm:$0xff]
    %v38 = vld [vmem:[%s1 + $0x78] sm:$0xff]
    %v39 = vld [vmem:[%s1 + $0x80] sm:$0xff]
    %v40 = vld [vmem:[%s1 + $0x88] sm:$0xff]
    %v41 = vld [vmem:[%s1 + $0x90] sm:$0xff]
    %v42 = vld [vmem:[%s1 + $0x98] sm:$0xff]
    %v43 = vld [vmem:[%s1 + $0xa0] sm:$0xff]
    %v44 = vld [vmem:[%s1 + $0xa8] sm:$0xff]
    %v45 = vld [vmem:[%s1 + $0xb0] sm:$0xff]
    %v46 = vld [vmem:[%s1 + $0xb8] sm:$0xff]
    %v47 = vld [vmem:[%s1 + $0xc0] sm:$0xff]
    %v48 = vld [vmem:[%s1 + $0xc8] sm:$0xff]
    %v49 = vld [vmem:[%s1 + $0xd0] sm:$0xff]
    %v50 = vld [vmem:[%s1 + $0xd8] sm:$0xff]
    %v51 = vld [vmem:[%s1 + $0xe0] sm:$0xff]
    %v52 = vld [vmem:[%s1 + $0xe8] sm:$0xff]
    %v53 = vld [vmem:[%s1 + $0xf0] sm:$0xff]
    %v54 = vld [vmem:[%s1 + $0xf8] sm:$0xff]
    %v55 = vld [vmem:[%s1 + $0x100] sm:$0xff]
    %v56 = vld [vmem:[%s1 + $0x108] sm:$0xff]
    %v57 = vld [vmem:[%s1 + $0x110] sm:$0xff]
    %v58 = vld [vmem:[%s1 + $0x118] sm:$0xff]
    %v59 = vld [vmem:[%s1 + $0x120] sm:$0xff]
    %v60 = vld [vmem:[%s1 + $0x128] sm:$0xff]
    %v61 = vld [vmem:[%s1 + $0x130] sm:$0xff]
    %v62 = vld [vmem:[%s1 + $0x138] sm:$0xff]
    %v63 = vld [vmem:[%s1 + $0x140] sm:$0xff]
    %v64 = vld [vmem:[%s1 + $0x148] sm:$0xff]
    %v65 = vld [vmem:[%s1 + $0x150] sm:$0xff]
    %v66 = vld [vmem:[%s1 + $0x158] sm:$0xff]
    %v67 = vld [vmem:[%s1 + $0x160] sm:$0xff]
    %v68 = vld [vmem:[%s1 + $0x168] sm:$0xff]
    %v69 = vld [vmem:[%s1 + $0x170] sm:$0xff]
    %v70 = vld [vmem:[%s1 + $0x178] sm:$0xff]
    %v71 = vld [vmem:[%s1 + $0x180] sm:$0xff]
    %v72 = vld [vmem:[%s1 + $0x188] sm:$0xff]
    %v73 = vld [vmem:[%s1 + $0x190] sm:$0xff]
    %v74 = vld [vmem:[%s1 + $0x198] sm:$0xff]
    %v75 = vld [vmem:[%s1 + $0x1a0] sm:$0xff]
    %v76 = vld [vmem:[%s1 + $0x1a8] sm:$0xff]
    %v77 = vld [vmem:[%s1 + $0x1b0] sm:$0xff]
    %v78 = vld [vmem:[%s1 + $0x1b8] sm:$0xff]
    %v79 = vld [vmem:[%s1 + $0x1c0] sm:$0xff]
    %v80 = vld [vmem:[%s1 + $0x1c8] sm:$0xff]
    %v81 = vld [vmem:[%s1 + $0x1d0] sm:$0xff]
    %v82 = vld [vmem:[%s1 + $0x1d8] sm:$0xff]
    %v83 = vld [vmem:[%s1 + $0x1e0] sm:$0xff]
    %v84 = vld [vmem:[%s1 + $0x1e8] sm:$0xff]
    %v85 = vld [vmem:[%s1 + $0x1f0] sm:$0xff]
    %v86 = vld [vmem:[%s1 + $0x1f8] sm:$0xff]
    %v87 = vld [vmem:[%s1 + $0x200] sm:$0xff]
    %v88 = vld [vmem:[%s1 + $0x208] sm:$0xff]
    %v89 = vld [vmem:[%s1 + $0x210] sm:$0xff]
    %v90 = vld [vmem:[%s1 + $0x218] sm:$0xff]
    %v91 = vld [vmem:[%s1 + $0x220] sm:$0xff]
    %v92 = vld [vmem:[%s1 + $0x228] sm:$0xff]
    %v93 = vld [vmem:[%s1 + $0x230] sm:$0xff]
    %v94 = vld [vmem:[%s1 + $0x238] sm:$0xff]
    %v95 = vld [vmem:[%s1 + $0x240] sm:$0xff]
    %v96 = vld [vmem:[%s1 + $0x248] sm:$0xff]
    %v97 = vld [vmem:[%s1 + $0x250] sm:$0xff]
    %v98 = vld [vmem:[%s1 + $0x258] sm:$0xff]
    %v99 = vld [vmem:[%s1 + $0x260] sm:$0xff]
    %v100 = vld [vmem:[%s1 + $0x268] sm:$0xff]
    %v101 = vld [vmem:[%s1 + $0x270] sm:$0xff]
    %v102 = vld [vmem:[%s1 + $0x278] sm:$0xff]
    %v103 = vld [vmem:[%s1 + $0x280] sm:$0xff]
    %v104 = vld [vmem:[%s1 + $0x288] sm:$0xff]
    %v105 = vld [vmem:[%s1 + $0x290] sm:$0xff]
    %v106 = vld [vmem:[%s1 + $0x298] sm:$0xff]
    %v107 = vld [vmem:[%s1 + $0x2a0] sm:$0xff]
    %v108 = vld [vmem:[%s1 + $0x2a8] sm:$0xff]
    %v109 = vld [vmem:[%s1 + $0x2b0] sm:$0xff]
    %v110 = vld [vmem:[%s1 + $0x2b8] sm:$0xff]
    %v111 = vld [vmem:[%s1 + $0x2c0] sm:$0xff]
    %v112 = vld [vmem:[%s1 + $0x2c8] sm:$0xff]
    %v113 = vld [vmem:[%s1 + $0x2d0] sm:$0xff]
    %v114 = vld [vmem:[%s1 + $0x2d8] sm:$0xff]
    %v115 = vld [vmem:[%s1 + $0x2e0] sm:$0xff]
    %v116 = vld [vmem:[%s1 + $0x2e8] sm:$0xff]
    %v117 = vld [vmem:[%s1 + $0x2f0] sm:$0xff]
    %v118 = vld [vmem:[%s1 + $0x2f8] sm:$0xff]
    %v119 = vld [vmem:[%s1 + $0x300] sm:$0xff]
    %v120 = vld [vmem:[%s1 + $0x308] sm:$0xff]
    %v121 = vld [vmem:[%s1 + $0x310] sm:$0xff]
    %v122 = vld [vmem:[%s1 + $0x318] sm:$0xff]
    %v123 = vld [vmem:[%s1 + $0x320] sm:$0xff]
    %v124 = vld [vmem:[%s1 + $0x328] sm:$0xff]
    %v125 = vld [vmem:[%s1 + $0x330] sm:$0xff]
    %v126 = vld [vmem:[%s1 + $0x338] sm:$0xff]
    %v127 = vld [vmem:[%s1 + $0x340] sm:$0xff]
    %v128 = vld [vmem:[%s1 + $0x348] sm:$0xff]
    %v129 = vld [vmem:[%s1 + $0x350] sm:$0xff]
    %v130 = vld [vmem:[%s1 + $0x358] sm:$0xff]
    %v131 = vld [vmem:[%s1 + $0x360] sm:$0xff]
    %v132 = vld [vmem:[%s1 + $0x368] sm:$0xff]
    %v133 = vld [vmem:[%s1 + $0x370] sm:$0xff]
    %v134 = vld [vmem:[%s1 + $0x378] sm:$0xff]
    %v135 = vld [vmem:[%s1 + $0x380] sm:$0xff]
    %v136 = vld [vmem:[%s1 + $0x388] sm:$0xff]
    %v137 = vld [vmem:[%s1 + $0x390] sm:$0xff]
    %v138 = vld [vmem:[%s1 + $0x398] sm:$0xff]
    %v139 = vld [vmem:[%s1 + $0x3a0] sm:$0xff]
    %v140 = vld [vmem:[%s1 + $0x3a8] sm:$0xff]
    %v141 = vld [vmem:[%s1 + $0x3b0] sm:$0xff]
    %v142 = vld [vmem:[%s1 + $0x3b8] sm:$0xff]
    %v143 = vld [vmem:[%s1 + $0x3c0] sm:$0xff]
    %v144 = vld [vmem:[%s1 + $0x3c8] sm:$0xff]
    %v145 = vld [vmem:[%s1 + $0x3d0] sm:$0xff]
    %v146 = vld [vmem:[%s1 + $0x3d8] sm:$0xff]
    %v147 = vld [vmem:[%s1 + $0x3e0] sm:$0xff]
    %v148 = vld [vmem:[%s1 + $0x3e8] sm:$0xff]
    %v149 = vld [vmem:[%s1 + $0x3f0] sm:$0xff]
    %v150 = vld [vmem:[%s1 + $0x3f8] sm:$0xff]
    %v151 = vld [vmem:[%s2] sm:$0xff]
    %v153 = vperm.slane %v151, 0
    %v154 = vperm.slane %v151, 1
    %v155 = vperm.slane %v151, 2
    %v156 = vperm.slane %v151, 3
    %v157 = vperm.slane %v151, 4
    %v158 = vperm.slane %v151, 5
    %v159 = vperm.slane %v151, 6
    %v160 = vperm.slane %v151, 7
    %169 = vmatpush.msra.mxu0 %v143
    %170 = vmatpush.msra.mxu0 %v135
    %171 = vmatpush.msra.mxu0 %v127
    %172 = vmatpush.msra.mxu0 %v119
    %173 = vmatpush.msra.mxu0 %v111
    %174 = vmatpush.msra.mxu0 %v103
    %175 = vmatpush.msra.mxu0 %v95
    %176 = vmatpush.msra.mxu0 %v87
    %177 = vmatpush.msra.mxu0 %v79
    %178 = vmatpush.msra.mxu0 %v71
    %179 = vmatpush.msra.mxu0 %v63
    %180 = vmatpush.msra.mxu0 %v55
    %181 = vmatpush.msra.mxu0 %v47
    %182 = vmatpush.msra.mxu0 %v39
    %183 = vmatpush.msra.mxu0 %v31
    %184 = vmatpush.msra.mxu0 %v23
    %185 = vmatmul.f32.gmra.mxu0 %v21
    %v186 = vpop.f32.mrf.mxu0
    %v187 = vadd.f32 %v153, %v186
    %188 = vmatmul.f32.gmra.mxu0 %v22
    %v189 = vpop.f32.mrf.mxu0
    %v190 = vadd.f32 %v153, %v189
    %191 = vdwg.mxu0
    %192 = vmatpush.msra.mxu0 %v144
    %193 = vmatpush.msra.mxu0 %v136
    %194 = vmatpush.msra.mxu0 %v128
    %195 = vmatpush.msra.mxu0 %v120
    %196 = vmatpush.msra.mxu0 %v112
    %197 = vmatpush.msra.mxu0 %v104
    %198 = vmatpush.msra.mxu0 %v96
    %199 = vmatpush.msra.mxu0 %v88
    %200 = vmatpush.msra.mxu0 %v80
    %201 = vmatpush.msra.mxu0 %v72
    %202 = vmatpush.msra.mxu0 %v64
    %203 = vmatpush.msra.mxu0 %v56
    %204 = vmatpush.msra.mxu0 %v48
    %205 = vmatpush.msra.mxu0 %v40
    %206 = vmatpush.msra.mxu0 %v32
    %207 = vmatpush.msra.mxu0 %v24
    %208 = vmatmul.f32.gmra.mxu0 %v21
    %v209 = vpop.f32.mrf.mxu0
    %v210 = vadd.f32 %v154, %v209
    %211 = vmatmul.f32.gmra.mxu0 %v22
    %v212 = vpop.f32.mrf.mxu0
    %v213 = vadd.f32 %v154, %v212
    %214 = vdwg.mxu0
    %215 = vmatpush.msra.mxu0 %v145
    %216 = vmatpush.msra.mxu0 %v137
    %217 = vmatpush.msra.mxu0 %v129
    %218 = vmatpush.msra.mxu0 %v121
    %219 = vmatpush.msra.mxu0 %v113
    %220 = vmatpush.msra.mxu0 %v105
    %221 = vmatpush.msra.mxu0 %v97
    %222 = vmatpush.msra.mxu0 %v89
    %223 = vmatpush.msra.mxu0 %v81
    %224 = vmatpush.msra.mxu0 %v73
    %225 = vmatpush.msra.mxu0 %v65
    %226 = vmatpush.msra.mxu0 %v57
    %227 = vmatpush.msra.mxu0 %v49
    %228 = vmatpush.msra.mxu0 %v41
    %229 = vmatpush.msra.mxu0 %v33
    %230 = vmatpush.msra.mxu0 %v25
    %231 = vmatmul.f32.gmra.mxu0 %v21
    %v232 = vpop.f32.mrf.mxu0
    %v233 = vadd.f32 %v155, %v232
    %234 = vmatmul.f32.gmra.mxu0 %v22
    %v235 = vpop.f32.mrf.mxu0
    %v236 = vadd.f32 %v155, %v235
    %237 = vdwg.mxu0
    %238 = vmatpush.msra.mxu0 %v146
    %239 = vmatpush.msra.mxu0 %v138
    %240 = vmatpush.msra.mxu0 %v130
    %241 = vmatpush.msra.mxu0 %v122
    %242 = vmatpush.msra.mxu0 %v114
    %243 = vmatpush.msra.mxu0 %v106
    %244 = vmatpush.msra.mxu0 %v98
    %245 = vmatpush.msra.mxu0 %v90
    %246 = vmatpush.msra.mxu0 %v82
    %247 = vmatpush.msra.mxu0 %v74
    %248 = vmatpush.msra.mxu0 %v66
    %249 = vmatpush.msra.mxu0 %v58
    %250 = vmatpush.msra.mxu0 %v50
    %251 = vmatpush.msra.mxu0 %v42
    %252 = vmatpush.msra.mxu0 %v34
    %253 = vmatpush.msra.mxu0 %v26
    %254 = vmatmul.f32.gmra.mxu0 %v21
    %v255 = vpop.f32.mrf.mxu0
    %v256 = vadd.f32 %v156, %v255
    %257 = vmatmul.f32.gmra.mxu0 %v22
    %v258 = vpop.f32.mrf.mxu0
    %v259 = vadd.f32 %v156, %v258
    %260 = vdwg.mxu0
    %261 = vmatpush.msra.mxu0 %v147
    %262 = vmatpush.msra.mxu0 %v139
    %263 = vmatpush.msra.mxu0 %v131
    %264 = vmatpush.msra.mxu0 %v123
    %265 = vmatpush.msra.mxu0 %v115
    %266 = vmatpush.msra.mxu0 %v107
    %267 = vmatpush.msra.mxu0 %v99
    %268 = vmatpush.msra.mxu0 %v91
    %269 = vmatpush.msra.mxu0 %v83
    %270 = vmatpush.msra.mxu0 %v75
    %271 = vmatpush.msra.mxu0 %v67
    %272 = vmatpush.msra.mxu0 %v59
    %273 = vmatpush.msra.mxu0 %v51
    %274 = vmatpush.msra.mxu0 %v43
    %275 = vmatpush.msra.mxu0 %v35
    %276 = vmatpush.msra.mxu0 %v27
    %277 = vmatmul.f32.gmra.mxu0 %v21
    %v278 = vpop.f32.mrf.mxu0
    %v279 = vadd.f32 %v157, %v278
    %280 = vmatmul.f32.gmra.mxu0 %v22
    %v281 = vpop.f32.mrf.mxu0
    %v282 = vadd.f32 %v157, %v281
    %283 = vdwg.mxu0
    %284 = vmatpush.msra.mxu0 %v148
    %285 = vmatpush.msra.mxu0 %v140
    %286 = vmatpush.msra.mxu0 %v132
    %287 = vmatpush.msra.mxu0 %v124
    %288 = vmatpush.msra.mxu0 %v116
    %289 = vmatpush.msra.mxu0 %v108
    %290 = vmatpush.msra.mxu0 %v100
    %291 = vmatpush.msra.mxu0 %v92
    %292 = vmatpush.msra.mxu0 %v84
    %293 = vmatpush.msra.mxu0 %v76
    %294 = vmatpush.msra.mxu0 %v68
    %295 = vmatpush.msra.mxu0 %v60
    %296 = vmatpush.msra.mxu0 %v52
    %297 = vmatpush.msra.mxu0 %v44
    %298 = vmatpush.msra.mxu0 %v36
    %299 = vmatpush.msra.mxu0 %v28
    %300 = vmatmul.f32.gmra.mxu0 %v21
    %v301 = vpop.f32.mrf.mxu0
    %v302 = vadd.f32 %v158, %v301
    %303 = vmatmul.f32.gmra.mxu0 %v22
    %v304 = vpop.f32.mrf.mxu0
    %v305 = vadd.f32 %v158, %v304
    %306 = vdwg.mxu0
    %307 = vmatpush.msra.mxu0 %v149
    %308 = vmatpush.msra.mxu0 %v141
    %309 = vmatpush.msra.mxu0 %v133
    %310 = vmatpush.msra.mxu0 %v125
    %311 = vmatpush.msra.mxu0 %v117
    %312 = vmatpush.msra.mxu0 %v109
    %313 = vmatpush.msra.mxu0 %v101
    %314 = vmatpush.msra.mxu0 %v93
    %315 = vmatpush.msra.mxu0 %v85
    %316 = vmatpush.msra.mxu0 %v77
    %317 = vmatpush.msra.mxu0 %v69
    %318 = vmatpush.msra.mxu0 %v61
    %319 = vmatpush.msra.mxu0 %v53
    %320 = vmatpush.msra.mxu0 %v45
    %321 = vmatpush.msra.mxu0 %v37
    %322 = vmatpush.msra.mxu0 %v29
    %323 = vmatmul.f32.gmra.mxu0 %v21
    %v324 = vpop.f32.mrf.mxu0
    %v325 = vadd.f32 %v159, %v324
    %326 = vmatmul.f32.gmra.mxu0 %v22
    %v327 = vpop.f32.mrf.mxu0
    %v328 = vadd.f32 %v159, %v327
    %329 = vdwg.mxu0
    %330 = vmatpush.msra.mxu0 %v150
    %331 = vmatpush.msra.mxu0 %v142
    %332 = vmatpush.msra.mxu0 %v134
    %333 = vmatpush.msra.mxu0 %v126
    %334 = vmatpush.msra.mxu0 %v118
    %335 = vmatpush.msra.mxu0 %v110
    %336 = vmatpush.msra.mxu0 %v102
    %337 = vmatpush.msra.mxu0 %v94
    %338 = vmatpush.msra.mxu0 %v86
    %339 = vmatpush.msra.mxu0 %v78
    %340 = vmatpush.msra.mxu0 %v70
    %341 = vmatpush.msra.mxu0 %v62
    %342 = vmatpush.msra.mxu0 %v54
    %343 = vmatpush.msra.mxu0 %v46
    %344 = vmatpush.msra.mxu0 %v38
    %345 = vmatpush.msra.mxu0 %v30
    %346 = vmatmul.f32.gmra.mxu0 %v21
    %v347 = vpop.f32.mrf.mxu0
    %v348 = vadd.f32 %v160, %v347
    %349 = vmatmul.f32.gmra.mxu0 %v22
    %v350 = vpop.f32.mrf.mxu0
    %v351 = vadd.f32 %v160, %v350
    %352 = vdwg.mxu0
    %v353 = vmul.f32 %v187, 0.5
    %v354 = vmul.f32 %v210, 0.5
    %v355 = vmul.f32 %v233, 0.5
    %v356 = vmul.f32 %v256, 0.5
    %v357 = vmul.f32 %v279, 0.5
    %v358 = vmul.f32 %v302, 0.5
    %v359 = vmul.f32 %v325, 0.5
    %v360 = vmul.f32 %v348, 0.5
    %v361 = vmul.f32 %v190, 0.5
    %v362 = vmul.f32 %v213, 0.5
    %v363 = vmul.f32 %v236, 0.5
    %v364 = vmul.f32 %v259, 0.5
    %v365 = vmul.f32 %v282, 0.5
    %v366 = vmul.f32 %v305, 0.5
    %v367 = vmul.f32 %v328, 0.5
    %v368 = vmul.f32 %v351, 0.5
    %v369 = vmul.f32 %v187, 0.044715
    %v370 = vmul.f32 %v210, 0.044715
    %v371 = vmul.f32 %v233, 0.044715
    %v372 = vmul.f32 %v256, 0.044715
    %v373 = vmul.f32 %v279, 0.044715
    %v374 = vmul.f32 %v302, 0.044715
    %v375 = vmul.f32 %v325, 0.044715
    %v376 = vmul.f32 %v348, 0.044715
    %v377 = vmul.f32 %v190, 0.044715
    %v378 = vmul.f32 %v213, 0.044715
    %v379 = vmul.f32 %v236, 0.044715
    %v380 = vmul.f32 %v259, 0.044715
    %v381 = vmul.f32 %v282, 0.044715
    %v382 = vmul.f32 %v305, 0.044715
    %v383 = vmul.f32 %v328, 0.044715
    %v384 = vmul.f32 %v351, 0.044715
    %v385 = vmul.f32 %v369, %v187
    %v386 = vmul.f32 %v370, %v210
    %v387 = vmul.f32 %v371, %v233
    %v388 = vmul.f32 %v372, %v256
    %v389 = vmul.f32 %v373, %v279
    %v390 = vmul.f32 %v374, %v302
    %v391 = vmul.f32 %v375, %v325
    %v392 = vmul.f32 %v376, %v348
    %v393 = vmul.f32 %v377, %v190
    %v394 = vmul.f32 %v378, %v213
    %v395 = vmul.f32 %v379, %v236
    %v396 = vmul.f32 %v380, %v259
    %v397 = vmul.f32 %v381, %v282
    %v398 = vmul.f32 %v382, %v305
    %v399 = vmul.f32 %v383, %v328
    %v400 = vmul.f32 %v384, %v351
    %v401 = vmul.f32 %v385, %v187
    %v402 = vmul.f32 %v386, %v210
    %v403 = vmul.f32 %v387, %v233
    %v404 = vmul.f32 %v388, %v256
    %v405 = vmul.f32 %v389, %v279
    %v406 = vmul.f32 %v390, %v302
    %v407 = vmul.f32 %v391, %v325
    %v408 = vmul.f32 %v392, %v348
    %v409 = vmul.f32 %v393, %v190
    %v410 = vmul.f32 %v394, %v213
    %v411 = vmul.f32 %v395, %v236
    %v412 = vmul.f32 %v396, %v259
    %v413 = vmul.f32 %v397, %v282
    %v414 = vmul.f32 %v398, %v305
    %v415 = vmul.f32 %v399, %v328
    %v416 = vmul.f32 %v400, %v351
    %v417 = vadd.f32 %v187, %v401
    %v418 = vadd.f32 %v210, %v402
    %v419 = vadd.f32 %v233, %v403
    %v420 = vadd.f32 %v256, %v404
    %v421 = vadd.f32 %v279, %v405
    %v422 = vadd.f32 %v302, %v406
    %v423 = vadd.f32 %v325, %v407
    %v424 = vadd.f32 %v348, %v408
    %v425 = vadd.f32 %v190, %v409
    %v426 = vadd.f32 %v213, %v410
    %v427 = vadd.f32 %v236, %v411
    %v428 = vadd.f32 %v259, %v412
    %v429 = vadd.f32 %v282, %v413
    %v430 = vadd.f32 %v305, %v414
    %v431 = vadd.f32 %v328, %v415
    %v432 = vadd.f32 %v351, %v416
    %v433 = vmul.f32 %v417, 0.7978846
    %v434 = vmul.f32 %v418, 0.7978846
    %v435 = vmul.f32 %v419, 0.7978846
    %v436 = vmul.f32 %v420, 0.7978846
    %v437 = vmul.f32 %v421, 0.7978846
    %v438 = vmul.f32 %v422, 0.7978846
    %v439 = vmul.f32 %v423, 0.7978846
    %v440 = vmul.f32 %v424, 0.7978846
    %v441 = vmul.f32 %v425, 0.7978846
    %v442 = vmul.f32 %v426, 0.7978846
    %v443 = vmul.f32 %v427, 0.7978846
    %v444 = vmul.f32 %v428, 0.7978846
    %v445 = vmul.f32 %v429, 0.7978846
    %v446 = vmul.f32 %v430, 0.7978846
    %v447 = vmul.f32 %v431, 0.7978846
    %v448 = vmul.f32 %v432, 0.7978846
    %v449 = vtanh.pop %v433
    %v450 = vtanh.pop %v434
    %v451 = vtanh.pop %v435
    %v452 = vtanh.pop %v436
    %v453 = vtanh.pop %v437
    %v454 = vtanh.pop %v438
    %v455 = vtanh.pop %v439
    %v456 = vtanh.pop %v440
    %v457 = vtanh.pop %v441
    %v458 = vtanh.pop %v442
    %v459 = vtanh.pop %v443
    %v460 = vtanh.pop %v444
    %v461 = vtanh.pop %v445
    %v462 = vtanh.pop %v446
    %v463 = vtanh.pop %v447
    %v464 = vtanh.pop %v448
    %v465 = vadd.f32 %v449, 1.0
    %v466 = vadd.f32 %v450, 1.0
    %v467 = vadd.f32 %v451, 1.0
    %v468 = vadd.f32 %v452, 1.0
    %v469 = vadd.f32 %v453, 1.0
    %v470 = vadd.f32 %v454, 1.0
    %v471 = vadd.f32 %v455, 1.0
    %v472 = vadd.f32 %v456, 1.0
    %v473 = vadd.f32 %v457, 1.0
    %v474 = vadd.f32 %v458, 1.0
    %v475 = vadd.f32 %v459, 1.0
    %v476 = vadd.f32 %v460, 1.0
    %v477 = vadd.f32 %v461, 1.0
    %v478 = vadd.f32 %v462, 1.0
    %v479 = vadd.f32 %v463, 1.0
    %v480 = vadd.f32 %v464, 1.0
    %v481 = vmul.f32 %v353, %v465
    %v482 = vmul.f32 %v354, %v466
    %v483 = vmul.f32 %v355, %v467
    %v484 = vmul.f32 %v356, %v468
    %v485 = vmul.f32 %v357, %v469
    %v486 = vmul.f32 %v358, %v470
    %v487 = vmul.f32 %v359, %v471
    %v488 = vmul.f32 %v360, %v472
    %v489 = vmul.f32 %v361, %v473
    %v490 = vmul.f32 %v362, %v474
    %v491 = vmul.f32 %v363, %v475
    %v492 = vmul.f32 %v364, %v476
    %v493 = vmul.f32 %v365, %v477
    %v494 = vmul.f32 %v366, %v478
    %v495 = vmul.f32 %v367, %v479
    %v496 = vmul.f32 %v368, %v480
    %v497 = vld [vmem:[%s3] sm:$0xff]
    %v498 = vld [vmem:[%s3 + $0x8] sm:$0xff]
    %v499 = vld [vmem:[%s3 + $0x10] sm:$0xff]
    %v500 = vld [vmem:[%s3 + $0x18] sm:$0xff]
    %v501 = vld [vmem:[%s3 + $0x20] sm:$0xff]
    %v502 = vld [vmem:[%s3 + $0x28] sm:$0xff]
    %v503 = vld [vmem:[%s3 + $0x30] sm:$0xff]
    %v504 = vld [vmem:[%s3 + $0x38] sm:$0xff]
    %v505 = vld [vmem:[%s3 + $0x40] sm:$0xff]
    %v506 = vld [vmem:[%s3 + $0x48] sm:$0xff]
    %v507 = vld [vmem:[%s3 + $0x50] sm:$0xff]
    %v508 = vld [vmem:[%s3 + $0x58] sm:$0xff]
    %v509 = vld [vmem:[%s3 + $0x60] sm:$0xff]
    %v510 = vld [vmem:[%s3 + $0x68] sm:$0xff]
    %v511 = vld [vmem:[%s3 + $0x70] sm:$0xff]
    %v512 = vld [vmem:[%s3 + $0x78] sm:$0xff]
    %v513 = vld [vmem:[%s3 + $0x80] sm:$0xff]
    %v514 = vld [vmem:[%s3 + $0x88] sm:$0xff]
    %v515 = vld [vmem:[%s3 + $0x90] sm:$0xff]
    %v516 = vld [vmem:[%s3 + $0x98] sm:$0xff]
    %v517 = vld [vmem:[%s3 + $0xa0] sm:$0xff]
    %v518 = vld [vmem:[%s3 + $0xa8] sm:$0xff]
    %v519 = vld [vmem:[%s3 + $0xb0] sm:$0xff]
    %v520 = vld [vmem:[%s3 + $0xb8] sm:$0xff]
    %v521 = vld [vmem:[%s3 + $0xc0] sm:$0xff]
    %v522 = vld [vmem:[%s3 + $0xc8] sm:$0xff]
    %v523 = vld [vmem:[%s3 + $0xd0] sm:$0xff]
    %v524 = vld [vmem:[%s3 + $0xd8] sm:$0xff]
    %v525 = vld [vmem:[%s3 + $0xe0] sm:$0xff]
    %v526 = vld [vmem:[%s3 + $0xe8] sm:$0xff]
    %v527 = vld [vmem:[%s3 + $0xf0] sm:$0xff]
    %v528 = vld [vmem:[%s3 + $0xf8] sm:$0xff]
    %v529 = vld [vmem:[%s3 + $0x100] sm:$0xff]
    %v530 = vld [vmem:[%s3 + $0x108] sm:$0xff]
    %v531 = vld [vmem:[%s3 + $0x110] sm:$0xff]
    %v532 = vld [vmem:[%s3 + $0x118] sm:$0xff]
    %v533 = vld [vmem:[%s3 + $0x120] sm:$0xff]
    %v534 = vld [vmem:[%s3 + $0x128] sm:$0xff]
    %v535 = vld [vmem:[%s3 + $0x130] sm:$0xff]
    %v536 = vld [vmem:[%s3 + $0x138] sm:$0xff]
    %v537 = vld [vmem:[%s3 + $0x140] sm:$0xff]
    %v538 = vld [vmem:[%s3 + $0x148] sm:$0xff]
    %v539 = vld [vmem:[%s3 + $0x150] sm:$0xff]
    %v540 = vld [vmem:[%s3 + $0x158] sm:$0xff]
    %v541 = vld [vmem:[%s3 + $0x160] sm:$0xff]
    %v542 = vld [vmem:[%s3 + $0x168] sm:$0xff]
    %v543 = vld [vmem:[%s3 + $0x170] sm:$0xff]
    %v544 = vld [vmem:[%s3 + $0x178] sm:$0xff]
    %v545 = vld [vmem:[%s3 + $0x180] sm:$0xff]
    %v546 = vld [vmem:[%s3 + $0x188] sm:$0xff]
    %v547 = vld [vmem:[%s3 + $0x190] sm:$0xff]
    %v548 = vld [vmem:[%s3 + $0x198] sm:$0xff]
    %v549 = vld [vmem:[%s3 + $0x1a0] sm:$0xff]
    %v550 = vld [vmem:[%s3 + $0x1a8] sm:$0xff]
    %v551 = vld [vmem:[%s3 + $0x1b0] sm:$0xff]
    %v552 = vld [vmem:[%s3 + $0x1b8] sm:$0xff]
    %v553 = vld [vmem:[%s3 + $0x1c0] sm:$0xff]
    %v554 = vld [vmem:[%s3 + $0x1c8] sm:$0xff]
    %v555 = vld [vmem:[%s3 + $0x1d0] sm:$0xff]
    %v556 = vld [vmem:[%s3 + $0x1d8] sm:$0xff]
    %v557 = vld [vmem:[%s3 + $0x1e0] sm:$0xff]
    %v558 = vld [vmem:[%s3 + $0x1e8] sm:$0xff]
    %v559 = vld [vmem:[%s3 + $0x1f0] sm:$0xff]
    %v560 = vld [vmem:[%s3 + $0x1f8] sm:$0xff]
    %v561 = vld [vmem:[%s3 + $0x200] sm:$0xff]
    %v562 = vld [vmem:[%s3 + $0x208] sm:$0xff]
    %v563 = vld [vmem:[%s3 + $0x210] sm:$0xff]
    %v564 = vld [vmem:[%s3 + $0x218] sm:$0xff]
    %v565 = vld [vmem:[%s3 + $0x220] sm:$0xff]
    %v566 = vld [vmem:[%s3 + $0x228] sm:$0xff]
    %v567 = vld [vmem:[%s3 + $0x230] sm:$0xff]
    %v568 = vld [vmem:[%s3 + $0x238] sm:$0xff]
    %v569 = vld [vmem:[%s3 + $0x240] sm:$0xff]
    %v570 = vld [vmem:[%s3 + $0x248] sm:$0xff]
    %v571 = vld [vmem:[%s3 + $0x250] sm:$0xff]
    %v572 = vld [vmem:[%s3 + $0x258] sm:$0xff]
    %v573 = vld [vmem:[%s3 + $0x260] sm:$0xff]
    %v574 = vld [vmem:[%s3 + $0x268] sm:$0xff]
    %v575 = vld [vmem:[%s3 + $0x270] sm:$0xff]
    %v576 = vld [vmem:[%s3 + $0x278] sm:$0xff]
    %v577 = vld [vmem:[%s3 + $0x280] sm:$0xff]
    %v578 = vld [vmem:[%s3 + $0x288] sm:$0xff]
    %v579 = vld [vmem:[%s3 + $0x290] sm:$0xff]
    %v580 = vld [vmem:[%s3 + $0x298] sm:$0xff]
    %v581 = vld [vmem:[%s3 + $0x2a0] sm:$0xff]
    %v582 = vld [vmem:[%s3 + $0x2a8] sm:$0xff]
    %v583 = vld [vmem:[%s3 + $0x2b0] sm:$0xff]
    %v584 = vld [vmem:[%s3 + $0x2b8] sm:$0xff]
    %v585 = vld [vmem:[%s3 + $0x2c0] sm:$0xff]
    %v586 = vld [vmem:[%s3 + $0x2c8] sm:$0xff]
    %v587 = vld [vmem:[%s3 + $0x2d0] sm:$0xff]
    %v588 = vld [vmem:[%s3 + $0x2d8] sm:$0xff]
    %v589 = vld [vmem:[%s3 + $0x2e0] sm:$0xff]
    %v590 = vld [vmem:[%s3 + $0x2e8] sm:$0xff]
    %v591 = vld [vmem:[%s3 + $0x2f0] sm:$0xff]
    %v592 = vld [vmem:[%s3 + $0x2f8] sm:$0xff]
    %v593 = vld [vmem:[%s3 + $0x300] sm:$0xff]
    %v594 = vld [vmem:[%s3 + $0x308] sm:$0xff]
    %v595 = vld [vmem:[%s3 + $0x310] sm:$0xff]
    %v596 = vld [vmem:[%s3 + $0x318] sm:$0xff]
    %v597 = vld [vmem:[%s3 + $0x320] sm:$0xff]
    %v598 = vld [vmem:[%s3 + $0x328] sm:$0xff]
    %v599 = vld [vmem:[%s3 + $0x330] sm:$0xff]
    %v600 = vld [vmem:[%s3 + $0x338] sm:$0xff]
    %v601 = vld [vmem:[%s3 + $0x340] sm:$0xff]
    %v602 = vld [vmem:[%s3 + $0x348] sm:$0xff]
    %v603 = vld [vmem:[%s3 + $0x350] sm:$0xff]
    %v604 = vld [vmem:[%s3 + $0x358] sm:$0xff]
    %v605 = vld [vmem:[%s3 + $0x360] sm:$0xff]
    %v606 = vld [vmem:[%s3 + $0x368] sm:$0xff]
    %v607 = vld [vmem:[%s3 + $0x370] sm:$0xff]
    %v608 = vld [vmem:[%s3 + $0x378] sm:$0xff]
    %v609 = vld [vmem:[%s3 + $0x380] sm:$0xff]
    %v610 = vld [vmem:[%s3 + $0x388] sm:$0xff]
    %v611 = vld [vmem:[%s3 + $0x390] sm:$0xff]
    %v612 = vld [vmem:[%s3 + $0x398] sm:$0xff]
    %v613 = vld [vmem:[%s3 + $0x3a0] sm:$0xff]
    %v614 = vld [vmem:[%s3 + $0x3a8] sm:$0xff]
    %v615 = vld [vmem:[%s3 + $0x3b0] sm:$0xff]
    %v616 = vld [vmem:[%s3 + $0x3b8] sm:$0xff]
    %v617 = vld [vmem:[%s3 + $0x3c0] sm:$0xff]
    %v618 = vld [vmem:[%s3 + $0x3c8] sm:$0xff]
    %v619 = vld [vmem:[%s3 + $0x3d0] sm:$0xff]
    %v620 = vld [vmem:[%s3 + $0x3d8] sm:$0xff]
    %v621 = vld [vmem:[%s3 + $0x3e0] sm:$0xff]
    %v622 = vld [vmem:[%s4] sm:$0x1]
    %v624 = vperm.slane %v622, 0
    %vm626 = vcmask 850944
    %v628 = vsel %vm626, %v488, 0
    %v631 = vsel %vm626, %v496, 0
    %633 = vmatpush.msra.mxu0 %v512
    %634 = vmatpush.msra.mxu0 %v511
    %635 = vmatpush.msra.mxu0 %v510
    %636 = vmatpush.msra.mxu0 %v509
    %637 = vmatpush.msra.mxu0 %v508
    %638 = vmatpush.msra.mxu0 %v507
    %639 = vmatpush.msra.mxu0 %v506
    %640 = vmatpush.msra.mxu0 %v505
    %641 = vmatpush.msra.mxu0 %v504
    %642 = vmatpush.msra.mxu0 %v503
    %643 = vmatpush.msra.mxu0 %v502
    %644 = vmatpush.msra.mxu0 %v501
    %645 = vmatpush.msra.mxu0 %v500
    %646 = vmatpush.msra.mxu0 %v499
    %647 = vmatpush.msra.mxu0 %v498
    %648 = vmatpush.msra.mxu0 %v497
    %649 = vmatmul.f32.gmra.mxu0 %v481
    %v650 = vpop.f32.mrf.mxu0
    %v651 = vadd.f32 %v624, %v650
    %652 = vmatmul.f32.gmra.mxu0 %v489
    %v653 = vpop.f32.mrf.mxu0
    %v654 = vadd.f32 %v624, %v653
    %655 = vdwg.mxu0
    %656 = vmatpush.msra.mxu0 %v528
    %657 = vmatpush.msra.mxu0 %v527
    %658 = vmatpush.msra.mxu0 %v526
    %659 = vmatpush.msra.mxu0 %v525
    %660 = vmatpush.msra.mxu0 %v524
    %661 = vmatpush.msra.mxu0 %v523
    %662 = vmatpush.msra.mxu0 %v522
    %663 = vmatpush.msra.mxu0 %v521
    %664 = vmatpush.msra.mxu0 %v520
    %665 = vmatpush.msra.mxu0 %v519
    %666 = vmatpush.msra.mxu0 %v518
    %667 = vmatpush.msra.mxu0 %v517
    %668 = vmatpush.msra.mxu0 %v516
    %669 = vmatpush.msra.mxu0 %v515
    %670 = vmatpush.msra.mxu0 %v514
    %671 = vmatpush.msra.mxu0 %v513
    %672 = vmatmul.f32.gmra.mxu0 %v482
    %v673 = vpop.f32.mrf.mxu0
    %v674 = vadd.f32 %v651, %v673
    %675 = vmatmul.f32.gmra.mxu0 %v490
    %v676 = vpop.f32.mrf.mxu0
    %v677 = vadd.f32 %v654, %v676
    %678 = vdwg.mxu0
    %679 = vmatpush.msra.mxu0 %v544
    %680 = vmatpush.msra.mxu0 %v543
    %681 = vmatpush.msra.mxu0 %v542
    %682 = vmatpush.msra.mxu0 %v541
    %683 = vmatpush.msra.mxu0 %v540
    %684 = vmatpush.msra.mxu0 %v539
    %685 = vmatpush.msra.mxu0 %v538
    %686 = vmatpush.msra.mxu0 %v537
    %687 = vmatpush.msra.mxu0 %v536
    %688 = vmatpush.msra.mxu0 %v535
    %689 = vmatpush.msra.mxu0 %v534
    %690 = vmatpush.msra.mxu0 %v533
    %691 = vmatpush.msra.mxu0 %v532
    %692 = vmatpush.msra.mxu0 %v531
    %693 = vmatpush.msra.mxu0 %v530
    %694 = vmatpush.msra.mxu0 %v529
    %695 = vmatmul.f32.gmra.mxu0 %v483
    %v696 = vpop.f32.mrf.mxu0
    %v697 = vadd.f32 %v674, %v696
    %698 = vmatmul.f32.gmra.mxu0 %v491
    %v699 = vpop.f32.mrf.mxu0
    %v700 = vadd.f32 %v677, %v699
    %701 = vdwg.mxu0
    %702 = vmatpush.msra.mxu0 %v560
    %703 = vmatpush.msra.mxu0 %v559
    %704 = vmatpush.msra.mxu0 %v558
    %705 = vmatpush.msra.mxu0 %v557
    %706 = vmatpush.msra.mxu0 %v556
    %707 = vmatpush.msra.mxu0 %v555
    %708 = vmatpush.msra.mxu0 %v554
    %709 = vmatpush.msra.mxu0 %v553
    %710 = vmatpush.msra.mxu0 %v552
    %711 = vmatpush.msra.mxu0 %v551
    %712 = vmatpush.msra.mxu0 %v550
    %713 = vmatpush.msra.mxu0 %v549
    %714 = vmatpush.msra.mxu0 %v548
    %715 = vmatpush.msra.mxu0 %v547
    %716 = vmatpush.msra.mxu0 %v546
    %717 = vmatpush.msra.mxu0 %v545
    %718 = vmatmul.f32.gmra.mxu0 %v484
    %v719 = vpop.f32.mrf.mxu0
    %v720 = vadd.f32 %v697, %v719
    %721 = vmatmul.f32.gmra.mxu0 %v492
    %v722 = vpop.f32.mrf.mxu0
    %v723 = vadd.f32 %v700, %v722
    %724 = vdwg.mxu0
    %725 = vmatpush.msra.mxu0 %v576
    %726 = vmatpush.msra.mxu0 %v575
    %727 = vmatpush.msra.mxu0 %v574
    %728 = vmatpush.msra.mxu0 %v573
    %729 = vmatpush.msra.mxu0 %v572
    %730 = vmatpush.msra.mxu0 %v571
    %731 = vmatpush.msra.mxu0 %v570
    %732 = vmatpush.msra.mxu0 %v569
    %733 = vmatpush.msra.mxu0 %v568
    %734 = vmatpush.msra.mxu0 %v567
    %735 = vmatpush.msra.mxu0 %v566
    %736 = vmatpush.msra.mxu0 %v565
    %737 = vmatpush.msra.mxu0 %v564
    %738 = vmatpush.msra.mxu0 %v563
    %739 = vmatpush.msra.mxu0 %v562
    %740 = vmatpush.msra.mxu0 %v561
    %741 = vmatmul.f32.gmra.mxu0 %v485
    %v742 = vpop.f32.mrf.mxu0
    %v743 = vadd.f32 %v720, %v742
    %744 = vmatmul.f32.gmra.mxu0 %v493
    %v745 = vpop.f32.mrf.mxu0
    %v746 = vadd.f32 %v723, %v745
    %747 = vdwg.mxu0
    %748 = vmatpush.msra.mxu0 %v592
    %749 = vmatpush.msra.mxu0 %v591
    %750 = vmatpush.msra.mxu0 %v590
    %751 = vmatpush.msra.mxu0 %v589
    %752 = vmatpush.msra.mxu0 %v588
    %753 = vmatpush.msra.mxu0 %v587
    %754 = vmatpush.msra.mxu0 %v586
    %755 = vmatpush.msra.mxu0 %v585
    %756 = vmatpush.msra.mxu0 %v584
    %757 = vmatpush.msra.mxu0 %v583
    %758 = vmatpush.msra.mxu0 %v582
    %759 = vmatpush.msra.mxu0 %v581
    %760 = vmatpush.msra.mxu0 %v580
    %761 = vmatpush.msra.mxu0 %v579
    %762 = vmatpush.msra.mxu0 %v578
    %763 = vmatpush.msra.mxu0 %v577
    %764 = vmatmul.f32.gmra.mxu0 %v486
    %v765 = vpop.f32.mrf.mxu0
    %v766 = vadd.f32 %v743, %v765
    %767 = vmatmul.f32.gmra.mxu0 %v494
    %v768 = vpop.f32.mrf.mxu0
    %v769 = vadd.f32 %v746, %v768
    %770 = vdwg.mxu0
    %771 = vmatpush.msra.mxu0 %v608
    %772 = vmatpush.msra.mxu0 %v607
    %773 = vmatpush.msra.mxu0 %v606
    %774 = vmatpush.msra.mxu0 %v605
    %775 = vmatpush.msra.mxu0 %v604
    %776 = vmatpush.msra.mxu0 %v603
    %777 = vmatpush.msra.mxu0 %v602
    %778 = vmatpush.msra.mxu0 %v601
    %779 = vmatpush.msra.mxu0 %v600
    %780 = vmatpush.msra.mxu0 %v599
    %781 = vmatpush.msra.mxu0 %v598
    %782 = vmatpush.msra.mxu0 %v597
    %783 = vmatpush.msra.mxu0 %v596
    %784 = vmatpush.msra.mxu0 %v595
    %785 = vmatpush.msra.mxu0 %v594
    %786 = vmatpush.msra.mxu0 %v593
    %787 = vmatmul.f32.gmra.mxu0 %v487
    %v788 = vpop.f32.mrf.mxu0
    %v789 = vadd.f32 %v766, %v788
    %790 = vmatmul.f32.gmra.mxu0 %v495
    %v791 = vpop.f32.mrf.mxu0
    %v792 = vadd.f32 %v769, %v791
    %793 = vdwg.mxu0
    %794 = vmatpush.msra.mxu0 0.0
    %795 = vmatpush.msra.mxu0 0.0
    %796 = vmatpush.msra.mxu0 0.0
    %797 = vmatpush.msra.mxu0 %v621
    %798 = vmatpush.msra.mxu0 %v620
    %799 = vmatpush.msra.mxu0 %v619
    %800 = vmatpush.msra.mxu0 %v618
    %801 = vmatpush.msra.mxu0 %v617
    %802 = vmatpush.msra.mxu0 %v616
    %803 = vmatpush.msra.mxu0 %v615
    %804 = vmatpush.msra.mxu0 %v614
    %805 = vmatpush.msra.mxu0 %v613
    %806 = vmatpush.msra.mxu0 %v612
    %807 = vmatpush.msra.mxu0 %v611
    %808 = vmatpush.msra.mxu0 %v610
    %809 = vmatpush.msra.mxu0 %v609
    %810 = vmatmul.f32.gmra.mxu0 %v628
    %v811 = vpop.f32.mrf.mxu0
    %v812 = vadd.f32 %v789, %v811
    %813 = vmatmul.f32.gmra.mxu0 %v631
    %v814 = vpop.f32.mrf.mxu0
    %v815 = vadd.f32 %v792, %v814
    %816 = vdwg.mxu0
    %817 = vst [vmem:[#allocation2] sm:$0xff] %v812
    %818 = vst [vmem:[#allocation2 + $0x8] sm:$0xff] %v815
    // Predicated region
    $region22: #{tpu_custom_call.1} parent=1 // pred_check
      _
    $region23: #{tpu_custom_call.1} parent=1 // pred_check_branch
      %820 = sbr.rel (0) target = $region25
    $region24: #{tpu_custom_call.1} parent=1 // pred_region
      %822 = vsyncadd [#allocation3], 0
      %s823 = sshll.u32 [#allocation2], 4
      %s824 = int_to_ptr.vmem [resolvable:$true] %s823
      %s825 = sshll.u32 %s5, 4
      %s826 = int_to_ptr.hbm [resolvable:$true] %s825
      %831 = dma.vmem_to_hbm [thread:$0]  %s824, 256, %s826, [#allocation3], 128, 128, 8
    $region25: #{tpu_custom_call.1} parent=1 // pred_fallthru
      _
    // Predicated region
    $region26: #{tpu_custom_call.1} parent=1 // pred_check
      _
    $region27: #{tpu_custom_call.1} parent=1 // pred_check_branch
      %833 = sbr.rel (0) target = $region29
    $region28: #{tpu_custom_call.1} parent=1 // pred_region
      %835 = dma.done [#allocation3], 256
    $region29: #{tpu_custom_call.1} parent=1 // pred_fallthru
      _
    %836 = vsyncpa [#allocation3], 1

</llo_original>
